<compile_context>
chip_gen: v6e
topology: v6e:2x2x1
jax: 0.10.0
libtpu: 0.0.40
codegen_flags: <defaults>
</compile_context>

<pallas_src>
import functools

import numpy as np
import jax
import jax.numpy as jnp
from jax.experimental import pallas as pl
from jax.experimental.pallas import tpu as pltpu


def _round_up(n, m):
    return ((n + m - 1) // m) * m


def normalize_n_freqs(in_features, n_freqs):
    if isinstance(n_freqs, int):
        n_freqs = [n_freqs for _ in range(in_features)]
    assert len(n_freqs) == in_features
    return list(n_freqs)


def make_freq_mat(in_features, n_freqs):
    """Identical to the PyTorch __init__ construction (used by the reference)."""
    n_freqs = normalize_n_freqs(in_features, n_freqs)
    eye = jnp.eye(in_features, dtype=jnp.float32)
    cols = [eye[i] * (2.0 ** j)
            for i in range(in_features) for j in range(n_freqs[i])]
    return jnp.stack(cols, axis=-1), n_freqs   # (in_features, F)


def _make_coef(in_features, n_freqs):
    """Constant table for the kernel.

    Rows 0..in_features-1, columns [0:F) and [F:2F): freq_mat row i duplicated
    (zeros except 2^j on the columns owned by feature i).
    Row in_features: phase = [pi/2]*F ++ [0]*F, so that
        sin(phase + x @ [freq|freq]) == [cos(x@freq) | sin(x@freq)].
    """
    F = sum(n_freqs)
    scale = np.zeros((in_features, F), dtype=np.float32)
    c = 0
    for i in range(in_features):
        for j in range(n_freqs[i]):
            scale[i, c] = 2.0 ** j
            c += 1
    coef = np.zeros((in_features + 1, 2 * F), dtype=np.float32)
    coef[:in_features, :F] = scale
    coef[:in_features, F:] = scale
    coef[in_features, :F] = np.pi / 2.0
    return coef


def _pos_enc_kernel(coef_ref, x_ref, o_ref, *, include_inputs, in_features):
    x = x_ref[...].astype(jnp.float32)                  # (tm, in_features)

    # ang[r, c] = phase[c] + sum_i x[r, i] * coef[i, c]
    # Built as broadcast multiplies against the tiny resident coef table
    # (pure VPU work, no MXU, no gather).  Directly at 2F lane width so one
    # sin() pass yields both cos(mapped) and sin(mapped).
    ang = coef_ref[in_features:in_features + 1, :]      # phase row, (1, 2F)
    for i in range(in_features):
        ang = ang + x[:, i:i + 1] * coef_ref[i:i + 1, :]
    sc = jnp.sin(ang)                                   # [cos | sin], (tm, 2F)

    if include_inputs:
        out = jnp.concatenate([x, sc], axis=-1)         # one lane concat (XLU)
    else:
        out = sc
    o_ref[...] = out.astype(o_ref.dtype)                # single full-tile store


def pos_encoding(x, n_freqs, *, include_inputs=False, tm=4096, out_dtype=None):
    """x: (..., in_features) -> (..., in_features*include_inputs + 2*sum(n_freqs))."""
    in_features = x.shape[-1]
    n_freqs = normalize_n_freqs(in_features, n_freqs)
    coef = jnp.asarray(_make_coef(in_features, n_freqs))   # (in_features+1, 2F)
    two_f = coef.shape[1]
    out_size = in_features * int(include_inputs) + two_f
    out_dtype = x.dtype if out_dtype is None else out_dtype

    lead_shape = x.shape[:-1]
    x2d = x.reshape(-1, in_features)
    N = x2d.shape[0]

    # Row tile selection:
    #  * multiple of 16 (safe sublane granularity for f32 and bf16 outputs),
    #  * capped at ceil(N/2) so the grid always has >= 2 steps (keeps both
    #    v7x TensorCores busy via the "parallel" axis),
    #  * default 4096 rows amortizes the ~0.35us per-grid-step overhead while
    #    staying well inside v7x's 64 MiB VMEM; v5e/v6e users may pass tm=8192.
    tm = max(16, _round_up(tm, 16))
    tm_eff = max(16, min(tm, _round_up(-(-N // 2), 16)))
    n_blocks = pl.cdiv(N, tm_eff)   # partial last block handled by Pallas masking

    kernel = functools.partial(
        _pos_enc_kernel,
        include_inputs=include_inputs,
        in_features=in_features,
    )

    out2d = pl.pallas_call(
        kernel,
        out_shape=jax.ShapeDtypeStruct((N, out_size), out_dtype),
        grid_spec=pltpu.PrefetchScalarGridSpec(
            num_scalar_prefetch=0,
            grid=(n_blocks,),
            in_specs=[
                # Tiny constant table, same block every step (stays resident).
                pl.BlockSpec((in_features + 1, two_f), lambda i: (0, 0)),
                # Row tile of the inputs; feature axis kept whole (lane axis).
                pl.BlockSpec((tm_eff, in_features), lambda i: (i, 0)),
            ],
            out_specs=pl.BlockSpec((tm_eff, out_size), lambda i: (i, 0)),
        ),
        compiler_params=pltpu.CompilerParams(
            dimension_semantics=("parallel",),
            vmem_limit_bytes=48 * 1024 * 1024,
        ),
    )(coef, x2d)

    return out2d.reshape(*lead_shape, out_size)


def pos_encoding_ref(x, freq_mat, *, include_inputs):
    mapped = x @ freq_mat
    parts = ([x] if include_inputs else []) + [jnp.cos(mapped), jnp.sin(mapped)]
    return jnp.concatenate(parts, axis=-1)


if __name__ == "__main__":
    # --- Test 1: uniform n_freqs, include_inputs=True (small demo shape) ---
    in_features, n_freqs, include_inputs = 4, 8, True
    batch, seq = 2, 64

    freq_mat, nf_list = make_freq_mat(in_features, n_freqs)
    expected_out_size = in_features * int(include_inputs) + 2 * sum(nf_list)

    key = jax.random.PRNGKey(0)
    x = jax.random.normal(key, (batch, seq, in_features), dtype=jnp.float32)

    out = jax.block_until_ready(
        pos_encoding(x, n_freqs, include_inputs=include_inputs))
    assert out.shape == (batch, seq, expected_out_size), out.shape

    ref = pos_encoding_ref(x, freq_mat, include_inputs=include_inputs)
    # atol=1e-4: the cos(m)=sin(m+pi/2) fusion perturbs the angle by at most
    # half-ulp(|m|+pi/2) ~ 3e-5 for |m| < 1024 (here |m| <~ 5*2^7), plus a few
    # output ulps of implementation difference in the sin lowering.
    assert jnp.allclose(out, ref, atol=1e-4, rtol=1e-5), "mismatch vs reference (test 1)"

    # --- Test 2: per-feature n_freqs, include_inputs=False, ragged N (21 rows) ---
    n_freqs2 = [2, 3, 4, 5]
    freq_mat2, nf2 = make_freq_mat(4, n_freqs2)
    x2 = jax.random.normal(jax.random.PRNGKey(1), (3, 7, 4), dtype=jnp.float32)

    out2 = jax.block_until_ready(
        pos_encoding(x2, n_freqs2, include_inputs=False))
    assert out2.shape == (3, 7, 2 * sum(nf2)), out2.shape

    ref2 = pos_encoding_ref(x2, freq_mat2, include_inputs=False)
    assert jnp.allclose(out2, ref2, atol=1e-4, rtol=1e-5), "mismatch vs reference (test 2)"

    # --- Test 3: bf16 output path (store-bound generations benefit most) ---
    out_bf16 = jax.block_until_ready(
        pos_encoding(x, n_freqs, include_inputs=include_inputs,
                     out_dtype=jnp.bfloat16))
    assert out_bf16.dtype == jnp.bfloat16
    assert jnp.allclose(out_bf16.astype(jnp.float32), ref, atol=1e-2, rtol=1e-2), \
        "mismatch vs reference (test 3, bf16)"

    print("KERNEL_OK")
</pallas_src>

<mosaic_0001>
module attributes {stable_mosaic.version = 11 : i64} {
  func.func @_pos_enc_kernel(%arg0: i32, %arg1: memref<5x64xf32, #tpu.memory_space<vmem>>, %arg2: memref<64x4xf32, #tpu.memory_space<vmem>>, %arg3: memref<64x68xf32, #tpu.memory_space<vmem>>) attributes {dimension_semantics = [#tpu.dimension_semantics<parallel>], iteration_bounds = array<i64: 2>, scalar_prefetch = 0 : i64, scratch_operands = 0 : i64, tpu.core_type = #tpu.core_type<tc>, window_params = [{pipeline_mode = #tpu.pipeline_mode<synchronous>, transform_indices = @transform_0, window_bounds = array<i64: 5, 64>}, {transform_indices = @transform_1, window_bounds = array<i64: 64, 4>}, {transform_indices = @transform_2, window_bounds = array<i64: 64, 68>}]} {
    %c0 = arith.constant 0 : index
    %c0_0 = arith.constant 0 : index
    %0 = vector.load %arg2[%c0, %c0_0] : memref<64x4xf32, #tpu.memory_space<vmem>>, vector<64x4xf32>
    %c4 = arith.constant 4 : index
    %c0_1 = arith.constant 0 : index
    %1 = vector.load %arg1[%c4, %c0_1] : memref<5x64xf32, #tpu.memory_space<vmem>>, vector<1x64xf32>
    %2 = vector.extract_strided_slice %0 {offsets = [0, 0], sizes = [64, 1], strides = [1, 1]} : vector<64x4xf32> to vector<64x1xf32>
    %c0_2 = arith.constant 0 : index
    %c0_3 = arith.constant 0 : index
    %3 = vector.load %arg1[%c0_2, %c0_3] : memref<5x64xf32, #tpu.memory_space<vmem>>, vector<1x64xf32>
    %4 = vector.broadcast %2 : vector<64x1xf32> to vector<64x64xf32>
    %5 = vector.broadcast %3 : vector<1x64xf32> to vector<64x64xf32>
    %6 = arith.mulf %4, %5 : vector<64x64xf32>
    %7 = vector.broadcast %1 : vector<1x64xf32> to vector<64x64xf32>
    %8 = arith.addf %7, %6 : vector<64x64xf32>
    %9 = vector.extract_strided_slice %0 {offsets = [0, 1], sizes = [64, 1], strides = [1, 1]} : vector<64x4xf32> to vector<64x1xf32>
    %c1 = arith.constant 1 : index
    %c0_4 = arith.constant 0 : index
    %10 = vector.load %arg1[%c1, %c0_4] : memref<5x64xf32, #tpu.memory_space<vmem>>, vector<1x64xf32>
    %11 = vector.broadcast %9 : vector<64x1xf32> to vector<64x64xf32>
    %12 = vector.broadcast %10 : vector<1x64xf32> to vector<64x64xf32>
    %13 = arith.mulf %11, %12 : vector<64x64xf32>
    %14 = arith.addf %8, %13 : vector<64x64xf32>
    %15 = vector.extract_strided_slice %0 {offsets = [0, 2], sizes = [64, 1], strides = [1, 1]} : vector<64x4xf32> to vector<64x1xf32>
    %c2 = arith.constant 2 : index
    %c0_5 = arith.constant 0 : index
    %16 = vector.load %arg1[%c2, %c0_5] : memref<5x64xf32, #tpu.memory_space<vmem>>, vector<1x64xf32>
    %17 = vector.broadcast %15 : vector<64x1xf32> to vector<64x64xf32>
    %18 = vector.broadcast %16 : vector<1x64xf32> to vector<64x64xf32>
    %19 = arith.mulf %17, %18 : vector<64x64xf32>
    %20 = arith.addf %14, %19 : vector<64x64xf32>
    %21 = vector.extract_strided_slice %0 {offsets = [0, 3], sizes = [64, 1], strides = [1, 1]} : vector<64x4xf32> to vector<64x1xf32>
    %c3 = arith.constant 3 : index
    %c0_6 = arith.constant 0 : index
    %22 = vector.load %arg1[%c3, %c0_6] : memref<5x64xf32, #tpu.memory_space<vmem>>, vector<1x64xf32>
    %23 = vector.broadcast %21 : vector<64x1xf32> to vector<64x64xf32>
    %24 = vector.broadcast %22 : vector<1x64xf32> to vector<64x64xf32>
    %25 = arith.mulf %23, %24 : vector<64x64xf32>
    %26 = arith.addf %20, %25 : vector<64x64xf32>
    %27 = math.sin %26 : vector<64x64xf32>
    %28 = tpu.concatenate %0, %27 in 1 : vector<64x4xf32>, vector<64x64xf32> -> vector<64x68xf32>
    %c0_7 = arith.constant 0 : index
    %c0_8 = arith.constant 0 : index
    %29 = vector.load %arg3[%c0_7, %c0_8] : memref<64x68xf32, #tpu.memory_space<vmem>>, vector<64x68xf32>
    tpu.vector_store %arg3[%c0_7, %c0_8], %28 {strides = array<i32>} : memref<64x68xf32, #tpu.memory_space<vmem>>, vector<64x68xf32>,
    return
  }
  func.func @transform_0(%arg0: i32) -> (i32, i32) {
    %c0_i32 = arith.constant 0 : i32
    %c0_i32_0 = arith.constant 0 : i32
    %c0_i32_1 = arith.constant 0 : i32
    return %c0_i32, %c0_i32_0 : i32, i32
  }
  func.func @transform_1(%arg0: i32) -> (i32, i32) {
    %c0_i32 = arith.constant 0 : i32
    %c0_i32_0 = arith.constant 0 : i32
    return %arg0, %c0_i32 : i32, i32
  }
  func.func @transform_2(%arg0: i32) -> (i32, i32) {
    %c0_i32 = arith.constant 0 : i32
    %c0_i32_0 = arith.constant 0 : i32
    return %arg0, %c0_i32 : i32, i32
  }
}

</mosaic_0001>

<llo_original>
// kernel: tpu_custom_call.1
$region0: #{tpu_custom_call.1}
  #allocation0 [shape = 'u32[]', space=smem, size = 0x4, offset = 0x4, fixed_abs, tag = 'smem constant byte address 0x4 - core index']
  #allocation1 [shape = 'u32[144,128]{1,0:T(1,128)}', space=vmem, size = 0x12000, scoped, tag = 'internal scratch']
  %s0 = inlined_call_operand.vmem [shape: f32[5,64], index: 0, kind: input, shape index: {}]
  %s1 = inlined_call_operand.vmem [shape: f32[128,4], index: 1, kind: input, shape index: {}]
  %s2 = inlined_call_operand.vmem [shape: f32[128,68], index: 2, kind: output, shape index: {}]
  %s3 = sld [smem:[#allocation0]]
  $region41: #{tpu_custom_call.1} parent=0
    _
  %s5 = ssub.s32 1, %s3
  %s6 = scalar_select 0, %s5, %s3
  loop: start=0, step=1, limit=4
  $region2: #{tpu_custom_call.1} parent=0 // loop_pre_header
    _
  $region3: #{tpu_custom_call.1} parent=0 // loop_header
    %s8 = sphi 0, %s12
    %p9 = scmp.ge.s32.totalorder %s8, 4
    %s16 = sphi 0, %s16
    %s18 = sphi 0, %s16
    %s19 = sphi 0, %s18
    %s33 = sphi 0, %s19
    %s39 = sphi 0, %s41
    %s42 = sphi 0, %s39
    %s43 = sphi 0, %s42
    %s59 = sphi 0, %s43
    %s65 = sphi 0, %s67
    %s68 = sphi 0, %s65
    %s69 = sphi 0, %s68
    %s85 = sphi 0, %s69
  $region4: #{tpu_custom_call.1} parent=0 // loop_header_branch
    %11 = sbr.rel (%p9) target = $region8
  $region5: #{tpu_custom_call.1} parent=0 // loop_body
    %s13 = ssub.s32 %s8, 1
    %s14 = ssub.s32 %s8, 2
    %s15 = sadd.s32 %s8, 1
    %s17 = sadd.s32 %s16, 1
    %p20 = scmp.eq.s32.totalorder %s8, 1
    %p21 = scmp.ne.s32.totalorder %s16, %s18
    %p22 = scmp.eq.s32.totalorder %s8, 0
    %p23 = por %p21, %p22
    %p24 = scmp.ne.s32.totalorder %s16, %s18
    %p25 = scmp.eq.s32.totalorder %s13, 1
    %p26 = por %p24, %p25
    %p27 = scmp.ne.s32.totalorder %s18, %s19
    %p28 = scmp.eq.s32.totalorder %s13, 0
    %p29 = por %p27, %p28
    %p30 = scmp.ne.s32.totalorder %s18, %s19
    %p31 = scmp.eq.s32.totalorder %s14, 1
    %p32 = por %p30, %p31
    %p34 = scmp.ne.s32.totalorder %s19, %s33
    %p35 = scmp.eq.s32.totalorder %s14, 0
    %p36 = por %p34, %p35
    %s37 = ssub.s32 %s8, %s15
    %p38 = scmp.eq.s32.totalorder %s37, 0
    %s40 = sadd.s32 %s39, 1
    %s41 = scalar_select %p38, %s39, %s40
    %p44 = pneg %p38
    %p45 = scmp.eq.s32.totalorder %s8, 1
    %p46 = por %p44, %p45
    %p47 = scmp.ne.s32.totalorder %s39, %s42
    %p48 = scmp.eq.s32.totalorder %s8, 0
    %p49 = por %p47, %p48
    %p50 = scmp.ne.s32.totalorder %s39, %s42
    %p51 = scmp.eq.s32.totalorder %s13, 1
    %p52 = por %p50, %p51
    %p53 = scmp.ne.s32.totalorder %s42, %s43
    %p54 = scmp.eq.s32.totalorder %s13, 0
    %p55 = por %p53, %p54
    %p56 = scmp.ne.s32.totalorder %s42, %s43
    %p57 = scmp.eq.s32.totalorder %s14, 1
    %p58 = por %p56, %p57
    %p60 = scmp.ne.s32.totalorder %s43, %s59
    %p61 = scmp.eq.s32.totalorder %s14, 0
    %p62 = por %p60, %p61
    %s63 = ssub.s32 %s8, %s15
    %p64 = scmp.eq.s32.totalorder %s63, 0
    %s66 = sadd.s32 %s65, 1
    %s67 = scalar_select %p64, %s65, %s66
    %p70 = pneg %p64
    %p71 = scmp.eq.s32.totalorder %s8, 1
    %p72 = por %p70, %p71
    %p73 = scmp.ne.s32.totalorder %s65, %s68
    %p74 = scmp.eq.s32.totalorder %s8, 0
    %p75 = por %p73, %p74
    %p76 = scmp.ne.s32.totalorder %s65, %s68
    %p77 = scmp.eq.s32.totalorder %s13, 1
    %p78 = por %p76, %p77
    %p79 = scmp.ne.s32.totalorder %s68, %s69
    %p80 = scmp.eq.s32.totalorder %s13, 0
    %p81 = por %p79, %p80
    %p82 = scmp.ne.s32.totalorder %s68, %s69
    %p83 = scmp.eq.s32.totalorder %s14, 1
    %p84 = por %p82, %p83
    %p86 = scmp.ne.s32.totalorder %s69, %s85
    %p87 = scmp.eq.s32.totalorder %s14, 0
    %p88 = por %p86, %p87
    %p89 = scmp.le.s32.totalorder 1, %s8
    %p90 = scmp.lt.s32.totalorder %s8, 3
    %p91 = pnand %p89, %p90
    %p92 = pneg %p91
    // Predicated region
    $region9: #{tpu_custom_call.1} parent=5 // pred_check
      _
    $region10: #{tpu_custom_call.1} parent=5 // pred_check_branch
      %94 = sbr.rel (%p91) target = $region12
    $region11: #{tpu_custom_call.1} parent=5 // pred_region
      %s95 = ssub.s32 %s8, 1
      // Predicated region
      $region13: #{tpu_custom_call.1} parent=11 // pred_check
        %p96 = pneg %p29
      $region14: #{tpu_custom_call.1} parent=11 // pred_check_branch
        %98 = sbr.rel (%p96) target = $region16
      $region15: #{tpu_custom_call.1} parent=11 // pred_region
        _
      $region16: #{tpu_custom_call.1} parent=11 // pred_fallthru
        _
    $region12: #{tpu_custom_call.1} parent=5 // pred_fallthru
      _
    %p99 = scmp.lt.s32.totalorder %s8, 2
    // Predicated region
    $region17: #{tpu_custom_call.1} parent=5 // pred_check
      %p100 = pneg %p99
    $region18: #{tpu_custom_call.1} parent=5 // pred_check_branch
      %102 = sbr.rel (%p100) target = $region20
    $region19: #{tpu_custom_call.1} parent=5 // pred_region
      // Predicated region
      $region21: #{tpu_custom_call.1} parent=19 // pred_check
        %p103 = pneg %p49
      $region22: #{tpu_custom_call.1} parent=19 // pred_check_branch
        %105 = sbr.rel (%p103) target = $region24
      $region23: #{tpu_custom_call.1} parent=19 // pred_region
        %s106 = smul.u32 8, %s8
        %p107 = scmp.lt.s32.totalorder %s106, 15
        %s108 = scalar_select %p107, %s106, 15
        %s109 = smul.addr %s108, 8
        %s110 = scalar_lea.vmem %s1, %s109
        %s111 = smul.u32 8, %s8
      $region24: #{tpu_custom_call.1} parent=19 // pred_fallthru
        _
    $region20: #{tpu_custom_call.1} parent=5 // pred_fallthru
      _
    %p112 = scmp.le.s32.totalorder 1, %s8
    %p113 = scmp.lt.s32.totalorder %s8, 3
    %p114 = pnand %p112, %p113
    %p115 = pneg %p114
    // Predicated region
    $region25: #{tpu_custom_call.1} parent=5 // pred_check
      _
    $region26: #{tpu_custom_call.1} parent=5 // pred_check_branch
      %117 = sbr.rel (%p114) target = $region28
    $region27: #{tpu_custom_call.1} parent=5 // pred_region
      %s118 = ssub.s32 %s8, 1
      %p119 = pneg %p29
      %p120 = pneg %p26
      %s121 = smul.u32 8, %s13
      %p122 = scmp.lt.s32.totalorder %s121, 15
      %s123 = scalar_select %p122, %s121, 15
      %s124 = smul.addr %s123, 8
      %s125 = scalar_lea.vmem %s1, %s124
      %p126 = pneg %p55
      %p127 = pneg %p52
      %p128 = pneg %p81
      %p129 = pneg %p78
      %s130 = smul.u32 8, %s13
      %p131 = scmp.lt.s32.totalorder %s130, 15
      %s132 = scalar_select %p131, %s130, 15
      %s133 = smul.addr %s132, 8
      %s134 = scalar_lea.vmem %s2, %s133
      %s135 = smul.u32 8, %s13
      %p136 = scmp.lt.s32.totalorder %s135, 15
      %s137 = scalar_select %p136, %s135, 15
      %s138 = smul.addr %s137, 8
      %s139 = scalar_lea.vmem %s1, %s138
      %s140 = smul.u32 8, %s13
      %s141 = smul.u32 8, %s13
      %p142 = scmp.lt.s32.totalorder %s141, 15
      %s143 = scalar_select %p142, %s141, 15
      %s144 = smul.addr %s143, 8
      %s145 = scalar_lea.vmem %s2, %s144
      %s146 = smul.u32 8, %s13
      %v147 = vld [vmem:[%s139] sm:$0xff]
      %v148 = vld [vmem:[%s139 + $0x8] sm:$0xff]
      %v149 = vld [vmem:[%s139 + $0x10] sm:$0xff]
      %v150 = vld [vmem:[%s139 + $0x18] sm:$0xff]
      %v151 = vld [vmem:[%s139 + $0x20] sm:$0xff]
      %v152 = vld [vmem:[%s139 + $0x28] sm:$0xff]
      %v153 = vld [vmem:[%s139 + $0x30] sm:$0xff]
      %v154 = vld [vmem:[%s139 + $0x38] sm:$0xff]
      %v155 = vld [vmem:[%s0 + $0x4] sm:$0x1]
      %v156 = vld [vmem:[%s0] sm:$0x1]
      %158 = vset.pattern.permute.xlu0 0
      %159 = vperm.xlu0 %158, %v147
      %v160 = vpop.permute.xlu0 %159
      %163 = vset.pattern.permute.xlu0 0
      %164 = vperm.xlu0 %163, %v148
      %v165 = vpop.permute.xlu0 %164
      %168 = vset.pattern.permute.xlu0 0
      %169 = vperm.xlu0 %168, %v149
      %v170 = vpop.permute.xlu0 %169
      %173 = vset.pattern.permute.xlu0 0
      %174 = vperm.xlu0 %173, %v150
      %v175 = vpop.permute.xlu0 %174
      %178 = vset.pattern.permute.xlu0 0
      %179 = vperm.xlu0 %178, %v151
      %v180 = vpop.permute.xlu0 %179
      %183 = vset.pattern.permute.xlu0 0
      %184 = vperm.xlu0 %183, %v152
      %v185 = vpop.permute.xlu0 %184
      %188 = vset.pattern.permute.xlu0 0
      %189 = vperm.xlu0 %188, %v153
      %v190 = vpop.permute.xlu0 %189
      %193 = vset.pattern.permute.xlu0 0
      %194 = vperm.xlu0 %193, %v154
      %v195 = vpop.permute.xlu0 %194
      %v197 = vlaneseq
      %v198 = vshrl.u32 %v197, 7
      %v199 = vsub.s32 0, %v198
      %v200 = vrot.slane %v156, %v199
      %v201 = vmul.f32 %v160, %v200
      %v202 = vmul.f32 %v165, %v200
      %v203 = vmul.f32 %v170, %v200
      %v204 = vmul.f32 %v175, %v200
      %v205 = vmul.f32 %v180, %v200
      %v206 = vmul.f32 %v185, %v200
      %v207 = vmul.f32 %v190, %v200
      %v208 = vmul.f32 %v195, %v200
      %v209 = vlaneseq
      %v210 = vshrl.u32 %v209, 7
      %v211 = vsub.s32 0, %v210
      %v212 = vrot.slane %v155, %v211
      %v213 = vadd.f32 %v212, %v201
      %v214 = vadd.f32 %v212, %v202
      %v215 = vadd.f32 %v212, %v203
      %v216 = vadd.f32 %v212, %v204
      %v217 = vadd.f32 %v212, %v205
      %v218 = vadd.f32 %v212, %v206
      %v219 = vadd.f32 %v212, %v207
      %v220 = vadd.f32 %v212, %v208
      %v221 = vld [vmem:[%s0 + $0x1] sm:$0x1]
      %222 = vset.pattern.permute.xlu0 1
      %223 = vperm.xlu0 %222, %v147
      %v224 = vpop.permute.xlu0 %223
      %226 = vset.pattern.permute.xlu0 1
      %227 = vperm.xlu0 %226, %v148
      %v228 = vpop.permute.xlu0 %227
      %230 = vset.pattern.permute.xlu0 1
      %231 = vperm.xlu0 %230, %v149
      %v232 = vpop.permute.xlu0 %231
      %234 = vset.pattern.permute.xlu0 1
      %235 = vperm.xlu0 %234, %v150
      %v236 = vpop.permute.xlu0 %235
      %238 = vset.pattern.permute.xlu0 1
      %239 = vperm.xlu0 %238, %v151
      %v240 = vpop.permute.xlu0 %239
      %242 = vset.pattern.permute.xlu0 1
      %243 = vperm.xlu0 %242, %v152
      %v244 = vpop.permute.xlu0 %243
      %246 = vset.pattern.permute.xlu0 1
      %247 = vperm.xlu0 %246, %v153
      %v248 = vpop.permute.xlu0 %247
      %250 = vset.pattern.permute.xlu0 1
      %251 = vperm.xlu0 %250, %v154
      %v252 = vpop.permute.xlu0 %251
      %v254 = vlaneseq
      %v255 = vshrl.u32 %v254, 7
      %v256 = vsub.s32 0, %v255
      %v257 = vrot.slane %v221, %v256
      %v258 = vmul.f32 %v224, %v257
      %v259 = vmul.f32 %v228, %v257
      %v260 = vmul.f32 %v232, %v257
      %v261 = vmul.f32 %v236, %v257
      %v262 = vmul.f32 %v240, %v257
      %v263 = vmul.f32 %v244, %v257
      %v264 = vmul.f32 %v248, %v257
      %v265 = vmul.f32 %v252, %v257
      %v266 = vadd.f32 %v213, %v258
      %v267 = vadd.f32 %v214, %v259
      %v268 = vadd.f32 %v215, %v260
      %v269 = vadd.f32 %v216, %v261
      %v270 = vadd.f32 %v217, %v262
      %v271 = vadd.f32 %v218, %v263
      %v272 = vadd.f32 %v219, %v264
      %v273 = vadd.f32 %v220, %v265
      %v274 = vld [vmem:[%s0 + $0x2] sm:$0x1]
      %275 = vset.pattern.permute.xlu0 2
      %276 = vperm.xlu0 %275, %v147
      %v277 = vpop.permute.xlu0 %276
      %279 = vset.pattern.permute.xlu0 2
      %280 = vperm.xlu0 %279, %v148
      %v281 = vpop.permute.xlu0 %280
      %283 = vset.pattern.permute.xlu0 2
      %284 = vperm.xlu0 %283, %v149
      %v285 = vpop.permute.xlu0 %284
      %287 = vset.pattern.permute.xlu0 2
      %288 = vperm.xlu0 %287, %v150
      %v289 = vpop.permute.xlu0 %288
      %291 = vset.pattern.permute.xlu0 2
      %292 = vperm.xlu0 %291, %v151
      %v293 = vpop.permute.xlu0 %292
      %295 = vset.pattern.permute.xlu0 2
      %296 = vperm.xlu0 %295, %v152
      %v297 = vpop.permute.xlu0 %296
      %299 = vset.pattern.permute.xlu0 2
      %300 = vperm.xlu0 %299, %v153
      %v301 = vpop.permute.xlu0 %300
      %303 = vset.pattern.permute.xlu0 2
      %304 = vperm.xlu0 %303, %v154
      %v305 = vpop.permute.xlu0 %304
      %v307 = vlaneseq
      %v308 = vshrl.u32 %v307, 7
      %v309 = vsub.s32 0, %v308
      %v310 = vrot.slane %v274, %v309
      %v311 = vmul.f32 %v277, %v310
      %v312 = vmul.f32 %v281, %v310
      %v313 = vmul.f32 %v285, %v310
      %v314 = vmul.f32 %v289, %v310
      %v315 = vmul.f32 %v293, %v310
      %v316 = vmul.f32 %v297, %v310
      %v317 = vmul.f32 %v301, %v310
      %v318 = vmul.f32 %v305, %v310
      %v319 = vadd.f32 %v266, %v311
      %v320 = vadd.f32 %v267, %v312
      %v321 = vadd.f32 %v268, %v313
      %v322 = vadd.f32 %v269, %v314
      %v323 = vadd.f32 %v270, %v315
      %v324 = vadd.f32 %v271, %v316
      %v325 = vadd.f32 %v272, %v317
      %v326 = vadd.f32 %v273, %v318
      %v327 = vld [vmem:[%s0 + $0x3] sm:$0x1]
      %328 = vset.pattern.permute.xlu0 3
      %329 = vperm.xlu0 %328, %v147
      %v330 = vpop.permute.xlu0 %329
      %332 = vset.pattern.permute.xlu0 3
      %333 = vperm.xlu0 %332, %v148
      %v334 = vpop.permute.xlu0 %333
      %336 = vset.pattern.permute.xlu0 3
      %337 = vperm.xlu0 %336, %v149
      %v338 = vpop.permute.xlu0 %337
      %340 = vset.pattern.permute.xlu0 3
      %341 = vperm.xlu0 %340, %v150
      %v342 = vpop.permute.xlu0 %341
      %344 = vset.pattern.permute.xlu0 3
      %345 = vperm.xlu0 %344, %v151
      %v346 = vpop.permute.xlu0 %345
      %348 = vset.pattern.permute.xlu0 3
      %349 = vperm.xlu0 %348, %v152
      %v350 = vpop.permute.xlu0 %349
      %352 = vset.pattern.permute.xlu0 3
      %353 = vperm.xlu0 %352, %v153
      %v354 = vpop.permute.xlu0 %353
      %356 = vset.pattern.permute.xlu0 3
      %357 = vperm.xlu0 %356, %v154
      %v358 = vpop.permute.xlu0 %357
      %v360 = vlaneseq
      %v361 = vshrl.u32 %v360, 7
      %v362 = vsub.s32 0, %v361
      %v363 = vrot.slane %v327, %v362
      %v364 = vmul.f32 %v330, %v363
      %v365 = vmul.f32 %v334, %v363
      %v366 = vmul.f32 %v338, %v363
      %v367 = vmul.f32 %v342, %v363
      %v368 = vmul.f32 %v346, %v363
      %v369 = vmul.f32 %v350, %v363
      %v370 = vmul.f32 %v354, %v363
      %v371 = vmul.f32 %v358, %v363
      %v372 = vadd.f32 %v319, %v364
      %v373 = vadd.f32 %v320, %v365
      %v374 = vadd.f32 %v321, %v366
      %v375 = vadd.f32 %v322, %v367
      %v376 = vadd.f32 %v323, %v368
      %v377 = vadd.f32 %v324, %v369
      %v378 = vadd.f32 %v325, %v370
      %v379 = vadd.f32 %v326, %v371
      %v380 = vand.u32 2147483647, %v372
      %vm381 = vcmp.le.f32.partialorder %v380, 0.7853982
      %vm382 = vcmp.lt.s32.totalorder %v372, 0
      %v383 = vand.u32 %v372, 2139095040
      %v384 = vshrl.u32 %v383, 23
      %v385 = vsub.s32 %v384, 127
      %v386 = vand.u32 2147483647, %v372
      %v387 = vand.u32 %v386, 8388607
      %v388 = vor.u32 %v387, 8388608
      %v389 = vsub.s32 0, %v388
      %v390 = vadd.s32 %v385, 1
      %vm391 = vcmp.gt.s32.totalorder %v390, 0
      %v392 = vsel %vm391, %v390, 0
      %v393 = vshrl.u32 %v392, 5
      %v394 = vand.u32 %v392, 31
      %v395 = vsub.s32 32, %v394
      %v396 = vshrl.u32 683565275, %v395
      %v397 = vshll.u32 683565275, %v394
      %v398 = vshrl.u32 2475754826, %v395
      %v399 = vor.u32 %v397, %v398
      %v400 = vshll.u32 2475754826, %v394
      %v401 = vshrl.u32 2131351028, %v395
      %v402 = vor.u32 %v400, %v401
      %v403 = vshll.u32 2131351028, %v394
      %v404 = vshrl.u32 2102212464, %v395
      %v405 = vor.u32 %v403, %v404
      %v406 = vshll.u32 2102212464, %v394
      %v407 = vshrl.u32 920167782, %v395
      %v408 = vor.u32 %v406, %v407
      %v409 = vshll.u32 920167782, %v394
      %v410 = vshrl.u32 1326507024, %v395
      %v411 = vor.u32 %v409, %v410
      %vm412 = vcmp.lt.s32.totalorder %v393, 1
      %vm413 = vcmp.lt.s32.totalorder %v393, 2
      %vm414 = vcmp.lt.s32.totalorder %v393, 3
      %vm415 = vcmp.lt.s32.totalorder %v393, 4
      %v416 = vsel %vm412, %v396, %v399
      %v417 = vsel %vm415, %v405, 2102212464
      %v418 = vsel %vm414, %v402, %v417
      %v419 = vsel %vm413, %v416, %v418
      %v420 = vsel %vm412, %v399, %v402
      %v421 = vsel %vm415, %v408, 920167782
      %v422 = vsel %vm414, %v405, %v421
      %v423 = vsel %vm413, %v420, %v422
      %v424 = vsel %vm412, %v402, %v405
      %v425 = vsel %vm415, %v411, 1326507024
      %v426 = vsel %vm414, %v408, %v425
      %v427 = vsel %vm413, %v424, %v426
      %v428 = vshll.u32 %v388, 8
      %v429 = vmul.u32.u64.compose %v428, %v427
      %v430 = vextract.low.u32 %v429
      %v431 = vextract.high.u32 %v429
      %v432 = vmul.u32.u64.compose %v428, %v423
      %v433 = vextract.low.u32 %v432
      %v434 = vextract.high.u32 %v432
      %v435 = vmul.u32 %v428, %v419
      %v436 = vadd.s32 %v431, %v433
      %vm437 = vc.u32 %v431, %v433
      %v438 = vadd.s32 %v434, 1
      %v439 = vsel %vm437, %v438, %v434
      %v440 = vadd.s32 %v435, %v439
      %v441 = vadd.s32 %v440, 536870912
      %v442 = vshrl.u32 %v441, 30
      %v443 = vshll.u32 %v442, 30
      %v444 = vsub.s32 %v440, %v443
      %vm445 = vcmp.lt.s32.totalorder %v444, 0
      %v446 = vsub.s32 0, %v444
      %v447 = vsel %vm445, %v446, %v444
      %v448 = vclz %v447
      %v449 = vsub.s32 %v448, 2
      %vm450 = vcmp.gt.s32.totalorder 0, %v449
      %v451 = vsel %vm450, 0, %v449
      %v452 = vsub.s32 32, %v451
      %v453 = vshll.u32 %v444, %v451
      %v454 = vshrl.u32 %v436, %v452
      %v455 = vor.u32 %v453, %v454
      %v456 = vsub.s32 4294967266, %v451
      %v457 = vadd.s32 %v456, 127
      %v458 = vshll.u32 %v457, 23
      %v459 = vor.u32 4788187, %v458
      %v460 = vand.u32 2147483647, %v459
      %v462 = vcvt.s32.f32 %v455
      %v463 = vmul.f32 %v462, %v460
      %v464 = vxor.u32 %v463, 2147483648
      %v465 = vsel %vm382, %v464, %v463
      %v466 = vsub.s32 4, %v442
      %v467 = vsel %vm382, %v466, %v442
      %v468 = vsel %vm381, %v372, %v465
      %v469 = vsel %vm381, 0, %v467
      %v470 = vcosq.f32.pop %v468
      %v471 = vsinq.f32.pop %v468
      %vm472 = vweird.f32 %v372
      %v473 = vadd.s32 %v469, 3
      %v474 = vand.u32 %v473, 3
      %vm475 = vcmp.lt.s32.totalorder %v474, 2
      %vm476 = vcmp.eq.s32.totalorder %v474, 0
      %v477 = vxor.u32 %v471, 2147483648
      %v478 = vsel %vm476, %v470, %v477
      %vm479 = vcmp.eq.s32.totalorder %v474, 2
      %v480 = vxor.u32 %v470, 2147483648
      %v481 = vsel %vm479, %v480, %v471
      %v482 = vsel %vm475, %v478, %v481
      %v483 = vsel %vm472, nan, %v482
      %v484 = vand.u32 2147483647, %v373
      %vm485 = vcmp.le.f32.partialorder %v484, 0.7853982
      %vm486 = vcmp.lt.s32.totalorder %v373, 0
      %v487 = vand.u32 %v373, 2139095040
      %v488 = vshrl.u32 %v487, 23
      %v489 = vsub.s32 %v488, 127
      %v490 = vand.u32 2147483647, %v373
      %v491 = vand.u32 %v490, 8388607
      %v492 = vor.u32 %v491, 8388608
      %v493 = vsub.s32 0, %v492
      %v494 = vadd.s32 %v489, 1
      %vm495 = vcmp.gt.s32.totalorder %v494, 0
      %v496 = vsel %vm495, %v494, 0
      %v497 = vshrl.u32 %v496, 5
      %v498 = vand.u32 %v496, 31
      %v499 = vsub.s32 32, %v498
      %v500 = vshrl.u32 683565275, %v499
      %v501 = vshll.u32 683565275, %v498
      %v502 = vshrl.u32 2475754826, %v499
      %v503 = vor.u32 %v501, %v502
      %v504 = vshll.u32 2475754826, %v498
      %v505 = vshrl.u32 2131351028, %v499
      %v506 = vor.u32 %v504, %v505
      %v507 = vshll.u32 2131351028, %v498
      %v508 = vshrl.u32 2102212464, %v499
      %v509 = vor.u32 %v507, %v508
      %v510 = vshll.u32 2102212464, %v498
      %v511 = vshrl.u32 920167782, %v499
      %v512 = vor.u32 %v510, %v511
      %v513 = vshll.u32 920167782, %v498
      %v514 = vshrl.u32 1326507024, %v499
      %v515 = vor.u32 %v513, %v514
      %vm516 = vcmp.lt.s32.totalorder %v497, 1
      %vm517 = vcmp.lt.s32.totalorder %v497, 2
      %vm518 = vcmp.lt.s32.totalorder %v497, 3
      %vm519 = vcmp.lt.s32.totalorder %v497, 4
      %v520 = vsel %vm516, %v500, %v503
      %v521 = vsel %vm519, %v509, 2102212464
      %v522 = vsel %vm518, %v506, %v521
      %v523 = vsel %vm517, %v520, %v522
      %v524 = vsel %vm516, %v503, %v506
      %v525 = vsel %vm519, %v512, 920167782
      %v526 = vsel %vm518, %v509, %v525
      %v527 = vsel %vm517, %v524, %v526
      %v528 = vsel %vm516, %v506, %v509
      %v529 = vsel %vm519, %v515, 1326507024
      %v530 = vsel %vm518, %v512, %v529
      %v531 = vsel %vm517, %v528, %v530
      %v532 = vshll.u32 %v492, 8
      %v533 = vmul.u32.u64.compose %v532, %v531
      %v534 = vextract.low.u32 %v533
      %v535 = vextract.high.u32 %v533
      %v536 = vmul.u32.u64.compose %v532, %v527
      %v537 = vextract.low.u32 %v536
      %v538 = vextract.high.u32 %v536
      %v539 = vmul.u32 %v532, %v523
      %v540 = vadd.s32 %v535, %v537
      %vm541 = vc.u32 %v535, %v537
      %v542 = vadd.s32 %v538, 1
      %v543 = vsel %vm541, %v542, %v538
      %v544 = vadd.s32 %v539, %v543
      %v545 = vadd.s32 %v544, 536870912
      %v546 = vshrl.u32 %v545, 30
      %v547 = vshll.u32 %v546, 30
      %v548 = vsub.s32 %v544, %v547
      %vm549 = vcmp.lt.s32.totalorder %v548, 0
      %v550 = vsub.s32 0, %v548
      %v551 = vsel %vm549, %v550, %v548
      %v552 = vclz %v551
      %v553 = vsub.s32 %v552, 2
      %vm554 = vcmp.gt.s32.totalorder 0, %v553
      %v555 = vsel %vm554, 0, %v553
      %v556 = vsub.s32 32, %v555
      %v557 = vshll.u32 %v548, %v555
      %v558 = vshrl.u32 %v540, %v556
      %v559 = vor.u32 %v557, %v558
      %v560 = vsub.s32 4294967266, %v555
      %v561 = vadd.s32 %v560, 127
      %v562 = vshll.u32 %v561, 23
      %v563 = vor.u32 4788187, %v562
      %v564 = vand.u32 2147483647, %v563
      %v566 = vcvt.s32.f32 %v559
      %v567 = vmul.f32 %v566, %v564
      %v568 = vxor.u32 %v567, 2147483648
      %v569 = vsel %vm486, %v568, %v567
      %v570 = vsub.s32 4, %v546
      %v571 = vsel %vm486, %v570, %v546
      %v572 = vsel %vm485, %v373, %v569
      %v573 = vsel %vm485, 0, %v571
      %v574 = vcosq.f32.pop %v572
      %v575 = vsinq.f32.pop %v572
      %vm576 = vweird.f32 %v373
      %v577 = vadd.s32 %v573, 3
      %v578 = vand.u32 %v577, 3
      %vm579 = vcmp.lt.s32.totalorder %v578, 2
      %vm580 = vcmp.eq.s32.totalorder %v578, 0
      %v581 = vxor.u32 %v575, 2147483648
      %v582 = vsel %vm580, %v574, %v581
      %vm583 = vcmp.eq.s32.totalorder %v578, 2
      %v584 = vxor.u32 %v574, 2147483648
      %v585 = vsel %vm583, %v584, %v575
      %v586 = vsel %vm579, %v582, %v585
      %v587 = vsel %vm576, nan, %v586
      %v588 = vand.u32 2147483647, %v374
      %vm589 = vcmp.le.f32.partialorder %v588, 0.7853982
      %vm590 = vcmp.lt.s32.totalorder %v374, 0
      %v591 = vand.u32 %v374, 2139095040
      %v592 = vshrl.u32 %v591, 23
      %v593 = vsub.s32 %v592, 127
      %v594 = vand.u32 2147483647, %v374
      %v595 = vand.u32 %v594, 8388607
      %v596 = vor.u32 %v595, 8388608
      %v597 = vsub.s32 0, %v596
      %v598 = vadd.s32 %v593, 1
      %vm599 = vcmp.gt.s32.totalorder %v598, 0
      %v600 = vsel %vm599, %v598, 0
      %v601 = vshrl.u32 %v600, 5
      %v602 = vand.u32 %v600, 31
      %v603 = vsub.s32 32, %v602
      %v604 = vshrl.u32 683565275, %v603
      %v605 = vshll.u32 683565275, %v602
      %v606 = vshrl.u32 2475754826, %v603
      %v607 = vor.u32 %v605, %v606
      %v608 = vshll.u32 2475754826, %v602
      %v609 = vshrl.u32 2131351028, %v603
      %v610 = vor.u32 %v608, %v609
      %v611 = vshll.u32 2131351028, %v602
      %v612 = vshrl.u32 2102212464, %v603
      %v613 = vor.u32 %v611, %v612
      %v614 = vshll.u32 2102212464, %v602
      %v615 = vshrl.u32 920167782, %v603
      %v616 = vor.u32 %v614, %v615
      %v617 = vshll.u32 920167782, %v602
      %v618 = vshrl.u32 1326507024, %v603
      %v619 = vor.u32 %v617, %v618
      %vm620 = vcmp.lt.s32.totalorder %v601, 1
      %vm621 = vcmp.lt.s32.totalorder %v601, 2
      %vm622 = vcmp.lt.s32.totalorder %v601, 3
      %vm623 = vcmp.lt.s32.totalorder %v601, 4
      %v624 = vsel %vm620, %v604, %v607
      %v625 = vsel %vm623, %v613, 2102212464
      %v626 = vsel %vm622, %v610, %v625
      %v627 = vsel %vm621, %v624, %v626
      %v628 = vsel %vm620, %v607, %v610
      %v629 = vsel %vm623, %v616, 920167782
      %v630 = vsel %vm622, %v613, %v629
      %v631 = vsel %vm621, %v628, %v630
      %v632 = vsel %vm620, %v610, %v613
      %v633 = vsel %vm623, %v619, 1326507024
      %v634 = vsel %vm622, %v616, %v633
      %v635 = vsel %vm621, %v632, %v634
      %v636 = vshll.u32 %v596, 8
      %v637 = vmul.u32.u64.compose %v636, %v635
      %v638 = vextract.low.u32 %v637
      %v639 = vextract.high.u32 %v637
      %v640 = vmul.u32.u64.compose %v636, %v631
      %v641 = vextract.low.u32 %v640
      %v642 = vextract.high.u32 %v640
      %v643 = vmul.u32 %v636, %v627
      %v644 = vadd.s32 %v639, %v641
      %vm645 = vc.u32 %v639, %v641
      %v646 = vadd.s32 %v642, 1
      %v647 = vsel %vm645, %v646, %v642
      %v648 = vadd.s32 %v643, %v647
      %v649 = vadd.s32 %v648, 536870912
      %v650 = vshrl.u32 %v649, 30
      %v651 = vshll.u32 %v650, 30
      %v652 = vsub.s32 %v648, %v651
      %vm653 = vcmp.lt.s32.totalorder %v652, 0
      %v654 = vsub.s32 0, %v652
      %v655 = vsel %vm653, %v654, %v652
      %v656 = vclz %v655
      %v657 = vsub.s32 %v656, 2
      %vm658 = vcmp.gt.s32.totalorder 0, %v657
      %v659 = vsel %vm658, 0, %v657
      %v660 = vsub.s32 32, %v659
      %v661 = vshll.u32 %v652, %v659
      %v662 = vshrl.u32 %v644, %v660
      %v663 = vor.u32 %v661, %v662
      %v664 = vsub.s32 4294967266, %v659
      %v665 = vadd.s32 %v664, 127
      %v666 = vshll.u32 %v665, 23
      %v667 = vor.u32 4788187, %v666
      %v668 = vand.u32 2147483647, %v667
      %v670 = vcvt.s32.f32 %v663
      %v671 = vmul.f32 %v670, %v668
      %v672 = vxor.u32 %v671, 2147483648
      %v673 = vsel %vm590, %v672, %v671
      %v674 = vsub.s32 4, %v650
      %v675 = vsel %vm590, %v674, %v650
      %v676 = vsel %vm589, %v374, %v673
      %v677 = vsel %vm589, 0, %v675
      %v678 = vcosq.f32.pop %v676
      %v679 = vsinq.f32.pop %v676
      %vm680 = vweird.f32 %v374
      %v681 = vadd.s32 %v677, 3
      %v682 = vand.u32 %v681, 3
      %vm683 = vcmp.lt.s32.totalorder %v682, 2
      %vm684 = vcmp.eq.s32.totalorder %v682, 0
      %v685 = vxor.u32 %v679, 2147483648
      %v686 = vsel %vm684, %v678, %v685
      %vm687 = vcmp.eq.s32.totalorder %v682, 2
      %v688 = vxor.u32 %v678, 2147483648
      %v689 = vsel %vm687, %v688, %v679
      %v690 = vsel %vm683, %v686, %v689
      %v691 = vsel %vm680, nan, %v690
      %v692 = vand.u32 2147483647, %v375
      %vm693 = vcmp.le.f32.partialorder %v692, 0.7853982
      %vm694 = vcmp.lt.s32.totalorder %v375, 0
      %v695 = vand.u32 %v375, 2139095040
      %v696 = vshrl.u32 %v695, 23
      %v697 = vsub.s32 %v696, 127
      %v698 = vand.u32 2147483647, %v375
      %v699 = vand.u32 %v698, 8388607
      %v700 = vor.u32 %v699, 8388608
      %v701 = vsub.s32 0, %v700
      %v702 = vadd.s32 %v697, 1
      %vm703 = vcmp.gt.s32.totalorder %v702, 0
      %v704 = vsel %vm703, %v702, 0
      %v705 = vshrl.u32 %v704, 5
      %v706 = vand.u32 %v704, 31
      %v707 = vsub.s32 32, %v706
      %v708 = vshrl.u32 683565275, %v707
      %v709 = vshll.u32 683565275, %v706
      %v710 = vshrl.u32 2475754826, %v707
      %v711 = vor.u32 %v709, %v710
      %v712 = vshll.u32 2475754826, %v706
      %v713 = vshrl.u32 2131351028, %v707
      %v714 = vor.u32 %v712, %v713
      %v715 = vshll.u32 2131351028, %v706
      %v716 = vshrl.u32 2102212464, %v707
      %v717 = vor.u32 %v715, %v716
      %v718 = vshll.u32 2102212464, %v706
      %v719 = vshrl.u32 920167782, %v707
      %v720 = vor.u32 %v718, %v719
      %v721 = vshll.u32 920167782, %v706
      %v722 = vshrl.u32 1326507024, %v707
      %v723 = vor.u32 %v721, %v722
      %vm724 = vcmp.lt.s32.totalorder %v705, 1
      %vm725 = vcmp.lt.s32.totalorder %v705, 2
      %vm726 = vcmp.lt.s32.totalorder %v705, 3
      %vm727 = vcmp.lt.s32.totalorder %v705, 4
      %v728 = vsel %vm724, %v708, %v711
      %v729 = vsel %vm727, %v717, 2102212464
      %v730 = vsel %vm726, %v714, %v729
      %v731 = vsel %vm725, %v728, %v730
      %v732 = vsel %vm724, %v711, %v714
      %v733 = vsel %vm727, %v720, 920167782
      %v734 = vsel %vm726, %v717, %v733
      %v735 = vsel %vm725, %v732, %v734
      %v736 = vsel %vm724, %v714, %v717
      %v737 = vsel %vm727, %v723, 1326507024
      %v738 = vsel %vm726, %v720, %v737
      %v739 = vsel %vm725, %v736, %v738
      %v740 = vshll.u32 %v700, 8
      %v741 = vmul.u32.u64.compose %v740, %v739
      %v742 = vextract.low.u32 %v741
      %v743 = vextract.high.u32 %v741
      %v744 = vmul.u32.u64.compose %v740, %v735
      %v745 = vextract.low.u32 %v744
      %v746 = vextract.high.u32 %v744
      %v747 = vmul.u32 %v740, %v731
      %v748 = vadd.s32 %v743, %v745
      %vm749 = vc.u32 %v743, %v745
      %v750 = vadd.s32 %v746, 1
      %v751 = vsel %vm749, %v750, %v746
      %v752 = vadd.s32 %v747, %v751
      %v753 = vadd.s32 %v752, 536870912
      %v754 = vshrl.u32 %v753, 30
      %v755 = vshll.u32 %v754, 30
      %v756 = vsub.s32 %v752, %v755
      %vm757 = vcmp.lt.s32.totalorder %v756, 0
      %v758 = vsub.s32 0, %v756
      %v759 = vsel %vm757, %v758, %v756
      %v760 = vclz %v759
      %v761 = vsub.s32 %v760, 2
      %vm762 = vcmp.gt.s32.totalorder 0, %v761
      %v763 = vsel %vm762, 0, %v761
      %v764 = vsub.s32 32, %v763
      %v765 = vshll.u32 %v756, %v763
      %v766 = vshrl.u32 %v748, %v764
      %v767 = vor.u32 %v765, %v766
      %v768 = vsub.s32 4294967266, %v763
      %v769 = vadd.s32 %v768, 127
      %v770 = vshll.u32 %v769, 23
      %v771 = vor.u32 4788187, %v770
      %v772 = vand.u32 2147483647, %v771
      %v774 = vcvt.s32.f32 %v767
      %v775 = vmul.f32 %v774, %v772
      %v776 = vxor.u32 %v775, 2147483648
      %v777 = vsel %vm694, %v776, %v775
      %v778 = vsub.s32 4, %v754
      %v779 = vsel %vm694, %v778, %v754
      %v780 = vsel %vm693, %v375, %v777
      %v781 = vsel %vm693, 0, %v779
      %v782 = vcosq.f32.pop %v780
      %v783 = vsinq.f32.pop %v780
      %vm784 = vweird.f32 %v375
      %v785 = vadd.s32 %v781, 3
      %v786 = vand.u32 %v785, 3
      %vm787 = vcmp.lt.s32.totalorder %v786, 2
      %vm788 = vcmp.eq.s32.totalorder %v786, 0
      %v789 = vxor.u32 %v783, 2147483648
      %v790 = vsel %vm788, %v782, %v789
      %vm791 = vcmp.eq.s32.totalorder %v786, 2
      %v792 = vxor.u32 %v782, 2147483648
      %v793 = vsel %vm791, %v792, %v783
      %v794 = vsel %vm787, %v790, %v793
      %v795 = vsel %vm784, nan, %v794
      %v796 = vand.u32 2147483647, %v376
      %vm797 = vcmp.le.f32.partialorder %v796, 0.7853982
      %vm798 = vcmp.lt.s32.totalorder %v376, 0
      %v799 = vand.u32 %v376, 2139095040
      %v800 = vshrl.u32 %v799, 23
      %v801 = vsub.s32 %v800, 127
      %v802 = vand.u32 2147483647, %v376
      %v803 = vand.u32 %v802, 8388607
      %v804 = vor.u32 %v803, 8388608
      %v805 = vsub.s32 0, %v804
      %v806 = vadd.s32 %v801, 1
      %vm807 = vcmp.gt.s32.totalorder %v806, 0
      %v808 = vsel %vm807, %v806, 0
      %v809 = vshrl.u32 %v808, 5
      %v810 = vand.u32 %v808, 31
      %v811 = vsub.s32 32, %v810
      %v812 = vshrl.u32 683565275, %v811
      %v813 = vshll.u32 683565275, %v810
      %v814 = vshrl.u32 2475754826, %v811
      %v815 = vor.u32 %v813, %v814
      %v816 = vshll.u32 2475754826, %v810
      %v817 = vshrl.u32 2131351028, %v811
      %v818 = vor.u32 %v816, %v817
      %v819 = vshll.u32 2131351028, %v810
      %v820 = vshrl.u32 2102212464, %v811
      %v821 = vor.u32 %v819, %v820
      %v822 = vshll.u32 2102212464, %v810
      %v823 = vshrl.u32 920167782, %v811
      %v824 = vor.u32 %v822, %v823
      %v825 = vshll.u32 920167782, %v810
      %v826 = vshrl.u32 1326507024, %v811
      %v827 = vor.u32 %v825, %v826
      %vm828 = vcmp.lt.s32.totalorder %v809, 1
      %vm829 = vcmp.lt.s32.totalorder %v809, 2
      %vm830 = vcmp.lt.s32.totalorder %v809, 3
      %vm831 = vcmp.lt.s32.totalorder %v809, 4
      %v832 = vsel %vm828, %v812, %v815
      %v833 = vsel %vm831, %v821, 2102212464
      %v834 = vsel %vm830, %v818, %v833
      %v835 = vsel %vm829, %v832, %v834
      %v836 = vsel %vm828, %v815, %v818
      %v837 = vsel %vm831, %v824, 920167782
      %v838 = vsel %vm830, %v821, %v837
      %v839 = vsel %vm829, %v836, %v838
      %v840 = vsel %vm828, %v818, %v821
      %v841 = vsel %vm831, %v827, 1326507024
      %v842 = vsel %vm830, %v824, %v841
      %v843 = vsel %vm829, %v840, %v842
      %v844 = vshll.u32 %v804, 8
      %v845 = vmul.u32.u64.compose %v844, %v843
      %v846 = vextract.low.u32 %v845
      %v847 = vextract.high.u32 %v845
      %v848 = vmul.u32.u64.compose %v844, %v839
      %v849 = vextract.low.u32 %v848
      %v850 = vextract.high.u32 %v848
      %v851 = vmul.u32 %v844, %v835
      %v852 = vadd.s32 %v847, %v849
      %vm853 = vc.u32 %v847, %v849
      %v854 = vadd.s32 %v850, 1
      %v855 = vsel %vm853, %v854, %v850
      %v856 = vadd.s32 %v851, %v855
      %v857 = vadd.s32 %v856, 536870912
      %v858 = vshrl.u32 %v857, 30
      %v859 = vshll.u32 %v858, 30
      %v860 = vsub.s32 %v856, %v859
      %vm861 = vcmp.lt.s32.totalorder %v860, 0
      %v862 = vsub.s32 0, %v860
      %v863 = vsel %vm861, %v862, %v860
      %v864 = vclz %v863
      %v865 = vsub.s32 %v864, 2
      %vm866 = vcmp.gt.s32.totalorder 0, %v865
      %v867 = vsel %vm866, 0, %v865
      %v868 = vsub.s32 32, %v867
      %v869 = vshll.u32 %v860, %v867
      %v870 = vshrl.u32 %v852, %v868
      %v871 = vor.u32 %v869, %v870
      %v872 = vsub.s32 4294967266, %v867
      %v873 = vadd.s32 %v872, 127
      %v874 = vshll.u32 %v873, 23
      %v875 = vor.u32 4788187, %v874
      %v876 = vand.u32 2147483647, %v875
      %v878 = vcvt.s32.f32 %v871
      %v879 = vmul.f32 %v878, %v876
      %v880 = vxor.u32 %v879, 2147483648
      %v881 = vsel %vm798, %v880, %v879
      %v882 = vsub.s32 4, %v858
      %v883 = vsel %vm798, %v882, %v858
      %v884 = vsel %vm797, %v376, %v881
      %v885 = vsel %vm797, 0, %v883
      %v886 = vcosq.f32.pop %v884
      %v887 = vsinq.f32.pop %v884
      %vm888 = vweird.f32 %v376
      %v889 = vadd.s32 %v885, 3
      %v890 = vand.u32 %v889, 3
      %vm891 = vcmp.lt.s32.totalorder %v890, 2
      %vm892 = vcmp.eq.s32.totalorder %v890, 0
      %v893 = vxor.u32 %v887, 2147483648
      %v894 = vsel %vm892, %v886, %v893
      %vm895 = vcmp.eq.s32.totalorder %v890, 2
      %v896 = vxor.u32 %v886, 2147483648
      %v897 = vsel %vm895, %v896, %v887
      %v898 = vsel %vm891, %v894, %v897
      %v899 = vsel %vm888, nan, %v898
      %v900 = vand.u32 2147483647, %v377
      %vm901 = vcmp.le.f32.partialorder %v900, 0.7853982
      %vm902 = vcmp.lt.s32.totalorder %v377, 0
      %v903 = vand.u32 %v377, 2139095040
      %v904 = vshrl.u32 %v903, 23
      %v905 = vsub.s32 %v904, 127
      %v906 = vand.u32 2147483647, %v377
      %v907 = vand.u32 %v906, 8388607
      %v908 = vor.u32 %v907, 8388608
      %v909 = vsub.s32 0, %v908
      %v910 = vadd.s32 %v905, 1
      %vm911 = vcmp.gt.s32.totalorder %v910, 0
      %v912 = vsel %vm911, %v910, 0
      %v913 = vshrl.u32 %v912, 5
      %v914 = vand.u32 %v912, 31
      %v915 = vsub.s32 32, %v914
      %v916 = vshrl.u32 683565275, %v915
      %v917 = vshll.u32 683565275, %v914
      %v918 = vshrl.u32 2475754826, %v915
      %v919 = vor.u32 %v917, %v918
      %v920 = vshll.u32 2475754826, %v914
      %v921 = vshrl.u32 2131351028, %v915
      %v922 = vor.u32 %v920, %v921
      %v923 = vshll.u32 2131351028, %v914
      %v924 = vshrl.u32 2102212464, %v915
      %v925 = vor.u32 %v923, %v924
      %v926 = vshll.u32 2102212464, %v914
      %v927 = vshrl.u32 920167782, %v915
      %v928 = vor.u32 %v926, %v927
      %v929 = vshll.u32 920167782, %v914
      %v930 = vshrl.u32 1326507024, %v915
      %v931 = vor.u32 %v929, %v930
      %vm932 = vcmp.lt.s32.totalorder %v913, 1
      %vm933 = vcmp.lt.s32.totalorder %v913, 2
      %vm934 = vcmp.lt.s32.totalorder %v913, 3
      %vm935 = vcmp.lt.s32.totalorder %v913, 4
      %v936 = vsel %vm932, %v916, %v919
      %v937 = vsel %vm935, %v925, 2102212464
      %v938 = vsel %vm934, %v922, %v937
      %v939 = vsel %vm933, %v936, %v938
      %v940 = vsel %vm932, %v919, %v922
      %v941 = vsel %vm935, %v928, 920167782
      %v942 = vsel %vm934, %v925, %v941
      %v943 = vsel %vm933, %v940, %v942
      %v944 = vsel %vm932, %v922, %v925
      %v945 = vsel %vm935, %v931, 1326507024
      %v946 = vsel %vm934, %v928, %v945
      %v947 = vsel %vm933, %v944, %v946
      %v948 = vshll.u32 %v908, 8
      %v949 = vmul.u32.u64.compose %v948, %v947
      %v950 = vextract.low.u32 %v949
      %v951 = vextract.high.u32 %v949
      %v952 = vmul.u32.u64.compose %v948, %v943
      %v953 = vextract.low.u32 %v952
      %v954 = vextract.high.u32 %v952
      %v955 = vmul.u32 %v948, %v939
      %v956 = vadd.s32 %v951, %v953
      %vm957 = vc.u32 %v951, %v953
      %v958 = vadd.s32 %v954, 1
      %v959 = vsel %vm957, %v958, %v954
      %v960 = vadd.s32 %v955, %v959
      %v961 = vadd.s32 %v960, 536870912
      %v962 = vshrl.u32 %v961, 30
      %v963 = vshll.u32 %v962, 30
      %v964 = vsub.s32 %v960, %v963
      %vm965 = vcmp.lt.s32.totalorder %v964, 0
      %v966 = vsub.s32 0, %v964
      %v967 = vsel %vm965, %v966, %v964
      %v968 = vclz %v967
      %v969 = vsub.s32 %v968, 2
      %vm970 = vcmp.gt.s32.totalorder 0, %v969
      %v971 = vsel %vm970, 0, %v969
      %v972 = vsub.s32 32, %v971
      %v973 = vshll.u32 %v964, %v971
      %v974 = vshrl.u32 %v956, %v972
      %v975 = vor.u32 %v973, %v974
      %v976 = vsub.s32 4294967266, %v971
      %v977 = vadd.s32 %v976, 127
      %v978 = vshll.u32 %v977, 23
      %v979 = vor.u32 4788187, %v978
      %v980 = vand.u32 2147483647, %v979
      %v982 = vcvt.s32.f32 %v975
      %v983 = vmul.f32 %v982, %v980
      %v984 = vxor.u32 %v983, 2147483648
      %v985 = vsel %vm902, %v984, %v983
      %v986 = vsub.s32 4, %v962
      %v987 = vsel %vm902, %v986, %v962
      %v988 = vsel %vm901, %v377, %v985
      %v989 = vsel %vm901, 0, %v987
      %v990 = vcosq.f32.pop %v988
      %v991 = vsinq.f32.pop %v988
      %vm992 = vweird.f32 %v377
      %v993 = vadd.s32 %v989, 3
      %v994 = vand.u32 %v993, 3
      %vm995 = vcmp.lt.s32.totalorder %v994, 2
      %vm996 = vcmp.eq.s32.totalorder %v994, 0
      %v997 = vxor.u32 %v991, 2147483648
      %v998 = vsel %vm996, %v990, %v997
      %vm999 = vcmp.eq.s32.totalorder %v994, 2
      %v1000 = vxor.u32 %v990, 2147483648
      %v1001 = vsel %vm999, %v1000, %v991
      %v1002 = vsel %vm995, %v998, %v1001
      %v1003 = vsel %vm992, nan, %v1002
      %v1004 = vand.u32 2147483647, %v378
      %vm1005 = vcmp.le.f32.partialorder %v1004, 0.7853982
      %vm1006 = vcmp.lt.s32.totalorder %v378, 0
      %v1007 = vand.u32 %v378, 2139095040
      %v1008 = vshrl.u32 %v1007, 23
      %v1009 = vsub.s32 %v1008, 127
      %v1010 = vand.u32 2147483647, %v378
      %v1011 = vand.u32 %v1010, 8388607
      %v1012 = vor.u32 %v1011, 8388608
      %v1013 = vsub.s32 0, %v1012
      %v1014 = vadd.s32 %v1009, 1
      %vm1015 = vcmp.gt.s32.totalorder %v1014, 0
      %v1016 = vsel %vm1015, %v1014, 0
      %v1017 = vshrl.u32 %v1016, 5
      %v1018 = vand.u32 %v1016, 31
      %v1019 = vsub.s32 32, %v1018
      %v1020 = vshrl.u32 683565275, %v1019
      %v1021 = vshll.u32 683565275, %v1018
      %v1022 = vshrl.u32 2475754826, %v1019
      %v1023 = vor.u32 %v1021, %v1022
      %v1024 = vshll.u32 2475754826, %v1018
      %v1025 = vshrl.u32 2131351028, %v1019
      %v1026 = vor.u32 %v1024, %v1025
      %v1027 = vshll.u32 2131351028, %v1018
      %v1028 = vshrl.u32 2102212464, %v1019
      %v1029 = vor.u32 %v1027, %v1028
      %v1030 = vshll.u32 2102212464, %v1018
      %v1031 = vshrl.u32 920167782, %v1019
      %v1032 = vor.u32 %v1030, %v1031
      %v1033 = vshll.u32 920167782, %v1018
      %v1034 = vshrl.u32 1326507024, %v1019
      %v1035 = vor.u32 %v1033, %v1034
      %vm1036 = vcmp.lt.s32.totalorder %v1017, 1
      %vm1037 = vcmp.lt.s32.totalorder %v1017, 2
      %vm1038 = vcmp.lt.s32.totalorder %v1017, 3
      %vm1039 = vcmp.lt.s32.totalorder %v1017, 4
      %v1040 = vsel %vm1036, %v1020, %v1023
      %v1041 = vsel %vm1039, %v1029, 2102212464
      %v1042 = vsel %vm1038, %v1026, %v1041
      %v1043 = vsel %vm1037, %v1040, %v1042
      %v1044 = vsel %vm1036, %v1023, %v1026
      %v1045 = vsel %vm1039, %v1032, 920167782
      %v1046 = vsel %vm1038, %v1029, %v1045
      %v1047 = vsel %vm1037, %v1044, %v1046
      %v1048 = vsel %vm1036, %v1026, %v1029
      %v1049 = vsel %vm1039, %v1035, 1326507024
      %v1050 = vsel %vm1038, %v1032, %v1049
      %v1051 = vsel %vm1037, %v1048, %v1050
      %v1052 = vshll.u32 %v1012, 8
      %v1053 = vmul.u32.u64.compose %v1052, %v1051
      %v1054 = vextract.low.u32 %v1053
      %v1055 = vextract.high.u32 %v1053
      %v1056 = vmul.u32.u64.compose %v1052, %v1047
      %v1057 = vextract.low.u32 %v1056
      %v1058 = vextract.high.u32 %v1056
      %v1059 = vmul.u32 %v1052, %v1043
      %v1060 = vadd.s32 %v1055, %v1057
      %vm1061 = vc.u32 %v1055, %v1057
      %v1062 = vadd.s32 %v1058, 1
      %v1063 = vsel %vm1061, %v1062, %v1058
      %v1064 = vadd.s32 %v1059, %v1063
      %v1065 = vadd.s32 %v1064, 536870912
      %v1066 = vshrl.u32 %v1065, 30
      %v1067 = vshll.u32 %v1066, 30
      %v1068 = vsub.s32 %v1064, %v1067
      %vm1069 = vcmp.lt.s32.totalorder %v1068, 0
      %v1070 = vsub.s32 0, %v1068
      %v1071 = vsel %vm1069, %v1070, %v1068
      %v1072 = vclz %v1071
      %v1073 = vsub.s32 %v1072, 2
      %vm1074 = vcmp.gt.s32.totalorder 0, %v1073
      %v1075 = vsel %vm1074, 0, %v1073
      %v1076 = vsub.s32 32, %v1075
      %v1077 = vshll.u32 %v1068, %v1075
      %v1078 = vshrl.u32 %v1060, %v1076
      %v1079 = vor.u32 %v1077, %v1078
      %v1080 = vsub.s32 4294967266, %v1075
      %v1081 = vadd.s32 %v1080, 127
      %v1082 = vshll.u32 %v1081, 23
      %v1083 = vor.u32 4788187, %v1082
      %v1084 = vand.u32 2147483647, %v1083
      %v1086 = vcvt.s32.f32 %v1079
      %v1087 = vmul.f32 %v1086, %v1084
      %v1088 = vxor.u32 %v1087, 2147483648
      %v1089 = vsel %vm1006, %v1088, %v1087
      %v1090 = vsub.s32 4, %v1066
      %v1091 = vsel %vm1006, %v1090, %v1066
      %v1092 = vsel %vm1005, %v378, %v1089
      %v1093 = vsel %vm1005, 0, %v1091
      %v1094 = vcosq.f32.pop %v1092
      %v1095 = vsinq.f32.pop %v1092
      %vm1096 = vweird.f32 %v378
      %v1097 = vadd.s32 %v1093, 3
      %v1098 = vand.u32 %v1097, 3
      %vm1099 = vcmp.lt.s32.totalorder %v1098, 2
      %vm1100 = vcmp.eq.s32.totalorder %v1098, 0
      %v1101 = vxor.u32 %v1095, 2147483648
      %v1102 = vsel %vm1100, %v1094, %v1101
      %vm1103 = vcmp.eq.s32.totalorder %v1098, 2
      %v1104 = vxor.u32 %v1094, 2147483648
      %v1105 = vsel %vm1103, %v1104, %v1095
      %v1106 = vsel %vm1099, %v1102, %v1105
      %v1107 = vsel %vm1096, nan, %v1106
      %v1108 = vand.u32 2147483647, %v379
      %vm1109 = vcmp.le.f32.partialorder %v1108, 0.7853982
      %vm1110 = vcmp.lt.s32.totalorder %v379, 0
      %v1111 = vand.u32 %v379, 2139095040
      %v1112 = vshrl.u32 %v1111, 23
      %v1113 = vsub.s32 %v1112, 127
      %v1114 = vand.u32 2147483647, %v379
      %v1115 = vand.u32 %v1114, 8388607
      %v1116 = vor.u32 %v1115, 8388608
      %v1117 = vsub.s32 0, %v1116
      %v1118 = vadd.s32 %v1113, 1
      %vm1119 = vcmp.gt.s32.totalorder %v1118, 0
      %v1120 = vsel %vm1119, %v1118, 0
      %v1121 = vshrl.u32 %v1120, 5
      %v1122 = vand.u32 %v1120, 31
      %v1123 = vsub.s32 32, %v1122
      %v1124 = vshrl.u32 683565275, %v1123
      %v1125 = vshll.u32 683565275, %v1122
      %v1126 = vshrl.u32 2475754826, %v1123
      %v1127 = vor.u32 %v1125, %v1126
      %v1128 = vshll.u32 2475754826, %v1122
      %v1129 = vshrl.u32 2131351028, %v1123
      %v1130 = vor.u32 %v1128, %v1129
      %v1131 = vshll.u32 2131351028, %v1122
      %v1132 = vshrl.u32 2102212464, %v1123
      %v1133 = vor.u32 %v1131, %v1132
      %v1134 = vshll.u32 2102212464, %v1122
      %v1135 = vshrl.u32 920167782, %v1123
      %v1136 = vor.u32 %v1134, %v1135
      %v1137 = vshll.u32 920167782, %v1122
      %v1138 = vshrl.u32 1326507024, %v1123
      %v1139 = vor.u32 %v1137, %v1138
      %vm1140 = vcmp.lt.s32.totalorder %v1121, 1
      %vm1141 = vcmp.lt.s32.totalorder %v1121, 2
      %vm1142 = vcmp.lt.s32.totalorder %v1121, 3
      %vm1143 = vcmp.lt.s32.totalorder %v1121, 4
      %v1144 = vsel %vm1140, %v1124, %v1127
      %v1145 = vsel %vm1143, %v1133, 2102212464
      %v1146 = vsel %vm1142, %v1130, %v1145
      %v1147 = vsel %vm1141, %v1144, %v1146
      %v1148 = vsel %vm1140, %v1127, %v1130
      %v1149 = vsel %vm1143, %v1136, 920167782
      %v1150 = vsel %vm1142, %v1133, %v1149
      %v1151 = vsel %vm1141, %v1148, %v1150
      %v1152 = vsel %vm1140, %v1130, %v1133
      %v1153 = vsel %vm1143, %v1139, 1326507024
      %v1154 = vsel %vm1142, %v1136, %v1153
      %v1155 = vsel %vm1141, %v1152, %v1154
      %v1156 = vshll.u32 %v1116, 8
      %v1157 = vmul.u32.u64.compose %v1156, %v1155
      %v1158 = vextract.low.u32 %v1157
      %v1159 = vextract.high.u32 %v1157
      %v1160 = vmul.u32.u64.compose %v1156, %v1151
      %v1161 = vextract.low.u32 %v1160
      %v1162 = vextract.high.u32 %v1160
      %v1163 = vmul.u32 %v1156, %v1147
      %v1164 = vadd.s32 %v1159, %v1161
      %vm1165 = vc.u32 %v1159, %v1161
      %v1166 = vadd.s32 %v1162, 1
      %v1167 = vsel %vm1165, %v1166, %v1162
      %v1168 = vadd.s32 %v1163, %v1167
      %v1169 = vadd.s32 %v1168, 536870912
      %v1170 = vshrl.u32 %v1169, 30
      %v1171 = vshll.u32 %v1170, 30
      %v1172 = vsub.s32 %v1168, %v1171
      %vm1173 = vcmp.lt.s32.totalorder %v1172, 0
      %v1174 = vsub.s32 0, %v1172
      %v1175 = vsel %vm1173, %v1174, %v1172
      %v1176 = vclz %v1175
      %v1177 = vsub.s32 %v1176, 2
      %vm1178 = vcmp.gt.s32.totalorder 0, %v1177
      %v1179 = vsel %vm1178, 0, %v1177
      %v1180 = vsub.s32 32, %v1179
      %v1181 = vshll.u32 %v1172, %v1179
      %v1182 = vshrl.u32 %v1164, %v1180
      %v1183 = vor.u32 %v1181, %v1182
      %v1184 = vsub.s32 4294967266, %v1179
      %v1185 = vadd.s32 %v1184, 127
      %v1186 = vshll.u32 %v1185, 23
      %v1187 = vor.u32 4788187, %v1186
      %v1188 = vand.u32 2147483647, %v1187
      %v1190 = vcvt.s32.f32 %v1183
      %v1191 = vmul.f32 %v1190, %v1188
      %v1192 = vxor.u32 %v1191, 2147483648
      %v1193 = vsel %vm1110, %v1192, %v1191
      %v1194 = vsub.s32 4, %v1170
      %v1195 = vsel %vm1110, %v1194, %v1170
      %v1196 = vsel %vm1109, %v379, %v1193
      %v1197 = vsel %vm1109, 0, %v1195
      %v1198 = vcosq.f32.pop %v1196
      %v1199 = vsinq.f32.pop %v1196
      %vm1200 = vweird.f32 %v379
      %v1201 = vadd.s32 %v1197, 3
      %v1202 = vand.u32 %v1201, 3
      %vm1203 = vcmp.lt.s32.totalorder %v1202, 2
      %vm1204 = vcmp.eq.s32.totalorder %v1202, 0
      %v1205 = vxor.u32 %v1199, 2147483648
      %v1206 = vsel %vm1204, %v1198, %v1205
      %vm1207 = vcmp.eq.s32.totalorder %v1202, 2
      %v1208 = vxor.u32 %v1198, 2147483648
      %v1209 = vsel %vm1207, %v1208, %v1199
      %v1210 = vsel %vm1203, %v1206, %v1209
      %v1211 = vsel %vm1200, nan, %v1210
      %1220 = vrot.lane.b32.xlu0 %v483, 4
      %v1221 = vpop.permute.xlu0 %1220
      %1222 = vrot.lane.b32.xlu0 %v587, 4
      %v1223 = vpop.permute.xlu0 %1222
      %1224 = vrot.lane.b32.xlu0 %v691, 4
      %v1225 = vpop.permute.xlu0 %1224
      %1226 = vrot.lane.b32.xlu0 %v795, 4
      %v1227 = vpop.permute.xlu0 %1226
      %1228 = vrot.lane.b32.xlu0 %v899, 4
      %v1229 = vpop.permute.xlu0 %1228
      %1230 = vrot.lane.b32.xlu0 %v1003, 4
      %v1231 = vpop.permute.xlu0 %1230
      %1232 = vrot.lane.b32.xlu0 %v1107, 4
      %v1233 = vpop.permute.xlu0 %1232
      %1234 = vrot.lane.b32.xlu0 %v1211, 4
      %v1235 = vpop.permute.xlu0 %1234
      %vm1244 = vcmask 31744
      %v1245 = vsel %vm1244, %v147, %v1221
      %v1246 = vsel %vm1244, %v148, %v1223
      %v1247 = vsel %vm1244, %v149, %v1225
      %v1248 = vsel %vm1244, %v150, %v1227
      %v1249 = vsel %vm1244, %v151, %v1229
      %v1250 = vsel %vm1244, %v152, %v1231
      %v1251 = vsel %vm1244, %v153, %v1233
      %v1252 = vsel %vm1244, %v154, %v1235
      %vm1253 = vcmask 556032
      %1254 = vst.msk [vmem:[%s145] sm:$0xff] %vm1253, %v1245
      %1255 = vst.msk [vmem:[%s145 + $0x8] sm:$0xff] %vm1253, %v1246
      %1256 = vst.msk [vmem:[%s145 + $0x10] sm:$0xff] %vm1253, %v1247
      %1257 = vst.msk [vmem:[%s145 + $0x18] sm:$0xff] %vm1253, %v1248
      %1258 = vst.msk [vmem:[%s145 + $0x20] sm:$0xff] %vm1253, %v1249
      %1259 = vst.msk [vmem:[%s145 + $0x28] sm:$0xff] %vm1253, %v1250
      %1260 = vst.msk [vmem:[%s145 + $0x30] sm:$0xff] %vm1253, %v1251
      %1261 = vst.msk [vmem:[%s145 + $0x38] sm:$0xff] %vm1253, %v1252
      %s1262 = smul.u32 8, %s13
      %p1263 = scmp.lt.s32.totalorder %s1262, 15
      %s1264 = scalar_select %p1263, %s1262, 15
      %s1265 = smul.addr %s1264, 8
      %s1266 = scalar_lea.vmem %s2, %s1265
      // Predicated region
      $region29: #{tpu_custom_call.1} parent=27 // pred_check
        %p1267 = pneg %p78
      $region30: #{tpu_custom_call.1} parent=27 // pred_check_branch
        %1269 = sbr.rel (%p1267) target = $region32
      $region31: #{tpu_custom_call.1} parent=27 // pred_region
        %s1270 = smul.u32 8, %s13
      $region32: #{tpu_custom_call.1} parent=27 // pred_fallthru
        _
    $region28: #{tpu_custom_call.1} parent=5 // pred_fallthru
      _
    %p1271 = scmp.le.s32.totalorder 2, %s8
    // Predicated region
    $region33: #{tpu_custom_call.1} parent=5 // pred_check
      %p1272 = pneg %p1271
    $region34: #{tpu_custom_call.1} parent=5 // pred_check_branch
      %1274 = sbr.rel (%p1272) target = $region36
    $region35: #{tpu_custom_call.1} parent=5 // pred_region
      %s1275 = ssub.s32 %s8, 2
      // Predicated region
      $region37: #{tpu_custom_call.1} parent=35 // pred_check
        %p1276 = pneg %p84
      $region38: #{tpu_custom_call.1} parent=35 // pred_check_branch
        %1278 = sbr.rel (%p1276) target = $region40
      $region39: #{tpu_custom_call.1} parent=35 // pred_region
        %s1279 = smul.u32 8, %s14
        %p1280 = scmp.lt.s32.totalorder %s1279, 15
        %s1281 = scalar_select %p1280, %s1279, 15
        %s1282 = smul.addr %s1281, 8
        %s1283 = scalar_lea.vmem %s2, %s1282
      $region40: #{tpu_custom_call.1} parent=35 // pred_fallthru
        _
    $region36: #{tpu_custom_call.1} parent=5 // pred_fallthru
      _
  $region6: #{tpu_custom_call.1} parent=0 // loop_footer
    %s12 = sadd.s32 1, %s8
  $region7: #{tpu_custom_call.1} parent=0 // loop_footer_branch
    %7 = sbr.rel target = $region3
  $region8: #{tpu_custom_call.1} parent=0 // loop_exit
    _

</llo_original>
